<compile_context>
chip_gen: v7x
topology: tpu7x:2x2x1
jax: 0.10.0
libtpu: 0.0.40
codegen_flags: <defaults>
</compile_context>

<pallas_src>
import numpy as np
import jax
import jax.numpy as jnp
from jax.experimental import pallas as pl
from jax.experimental.pallas import tpu as pltpu

# Small, module-consistent shapes (original: n_inputs=943, n_hidden=argv,
# n_outputs=4760, training-set size 2921).
N_TRAIN     = 8
N_INPUTS    = 16
N_HIDDEN    = 32
N_OUTPUTS   = 24
N_PARTICLES = 3

PARAM_DIM = N_INPUTS * N_HIDDEN + N_HIDDEN + N_HIDDEN * N_OUTPUTS + N_OUTPUTS

# torch: / (2921 * n_outputs); 2921 == full training-set size, played here by
# N_TRAIN.  Must be replaced by 2921 when scaling to real D-Gex shapes.
_MAE_SCALE = 1.0 / (N_TRAIN * N_OUTPUTS)


def _pso_eval_kernel(x_ref, y_ref, w1_ref, b1_ref, w2_ref, b2_ref, o_ref):
    """One particle per grid step: 2-layer tanh MLP + full |err| reduction.

    x:  (N, n_in)   bf16  (block 0 -> resident across the particle grid)
    y:  (N, n_out)  f32   (block 0 -> resident)
    w1: (1, n_in, n_hid)  bf16    b1: (1, 1, n_hid)  f32
    w2: (1, n_hid, n_out) bf16    b2: (1, 1, n_out)  f32
    o:  (1, 1, 1)   f32   per-particle MAE (1/(N*out) scale folded in)
    """
    # Layer 1: bf16 MXU matmul, f32 accumulate; tanh in f32 (no bf16 EUP on v5e).
    h = jnp.tanh(
        jnp.dot(x_ref[...], w1_ref[0], preferred_element_type=jnp.float32)
        + b1_ref[0])                                                  # (N, n_hid) f32

    # TODO(synk): nn.Dropout(p) is stochastic in PyTorch train mode; applied as
    # identity (eval-mode semantics) since torch RNG is not reproducible here.

    # Layer 2: bf16 MXU matmul, f32 accumulate.
    pred = (jnp.dot(h.astype(jnp.bfloat16), w2_ref[0],
                    preferred_element_type=jnp.float32)
            + b2_ref[0])                                              # (N, n_out) f32

    err = jnp.abs(pred - y_ref[...])                                  # (N, n_out)
    # Finish the reduction in-kernel (sublane reduce over N, lane reduce over out).
    # TODO(synk): at real scale, do the lane reduce as col @ ones((tile_out, 1))
    # on the MXU and accumulate into f32 VMEM scratch with @pl.when init/finalize.
    col = jnp.sum(err, axis=0, keepdims=True)                         # (1, n_out)
    o_ref[0] = jnp.sum(col, axis=1, keepdims=True) * _MAE_SCALE       # (1, 1)


def pso_mae_pallas(x_bf16, y, w1, b1, w2, b2):
    """x: (N, n_in) bf16; y: (N, n_out) f32; stacked dense per-particle weights.

    Returns (P,) f32 MAE per particle (already scaled by 1/(N*n_out))."""
    P, n_in, n_hid = w1.shape
    n_out = w2.shape[2]
    N = x_bf16.shape[0]
    out = pl.pallas_call(
        _pso_eval_kernel,
        out_shape=jax.ShapeDtypeStruct((P, 1, 1), jnp.float32),
        grid=(P,),
        in_specs=[
            pl.BlockSpec((N, n_in),         lambda p: (0, 0)),        # X resident
            pl.BlockSpec((N, n_out),        lambda p: (0, 0)),        # Y resident
            pl.BlockSpec((1, n_in, n_hid),  lambda p: (p, 0, 0)),
            pl.BlockSpec((1, 1, n_hid),     lambda p: (p, 0, 0)),
            pl.BlockSpec((1, n_hid, n_out), lambda p: (p, 0, 0)),
            pl.BlockSpec((1, 1, n_out),     lambda p: (p, 0, 0)),
        ],
        out_specs=pl.BlockSpec((1, 1, 1), lambda p: (p, 0, 0)),
        compiler_params=pltpu.CompilerParams(
            dimension_semantics=("parallel",)),   # 2 TCs on v7x; neutral elsewhere
    )(x_bf16, y, w1, b1, w2, b2)
    return out[:, 0, 0]                                               # (P,)


def _split_params(vecs):
    """Mirror of Network.vecToMat for a stacked (P, D) f32 param matrix.

    Returns dense (in, out)-layout bf16 weight stacks + f32 biases (no padding)."""
    o1 = N_INPUTS * N_HIDDEN
    o2 = o1 + N_HIDDEN
    o3 = o2 + N_HIDDEN * N_OUTPUTS
    P = vecs.shape[0]
    w1 = vecs[:, :o1].reshape(P, N_HIDDEN, N_INPUTS)        # fc1.weight (out, in)
    b1 = vecs[:, o1:o2].reshape(P, 1, N_HIDDEN)             # fc1.bias
    w2 = vecs[:, o2:o3].reshape(P, N_OUTPUTS, N_HIDDEN)     # fc2.weight (out, in)
    b2 = vecs[:, o3:].reshape(P, 1, N_OUTPUTS)              # fc2.bias
    w1t = jnp.transpose(w1, (0, 2, 1)).astype(jnp.bfloat16)  # (P, in, hid) bf16
    w2t = jnp.transpose(w2, (0, 2, 1)).astype(jnp.bfloat16)  # (P, hid, out) bf16
    return w1t, b1, w2t, b2


@jax.jit
def _pso_mae(x, y, vecs):
    """Single fused device program: vecToMat prep + Pallas fitness kernel."""
    w1, b1, w2, b2 = _split_params(vecs)
    return pso_mae_pallas(x.astype(jnp.bfloat16), y, w1, b1, w2, b2)


def _ref_mae(x, y, vecs):
    """Pure-JAX reference with the same bf16 casts as the kernel path."""
    w1, b1, w2, b2 = _split_params(vecs)
    xb = x.astype(jnp.bfloat16)
    h = jnp.tanh(jnp.einsum('ni,pih->pnh', xb, w1,
                            preferred_element_type=jnp.float32) + b1)
    pred = jnp.einsum('pnh,pho->pno', h.astype(jnp.bfloat16), w2,
                      preferred_element_type=jnp.float32) + b2
    return jnp.sum(jnp.abs(pred - y[None]), axis=(1, 2)) * _MAE_SCALE


def network_forward(params, localbcosts, x_train, y_train, check=False):
    """Equivalent of Network.forward(params, localbcosts).

    params:      numpy (P, 2, D) — [:,0,:] position, [:,1,:] personal best (mutated in place)
    localbcosts: numpy (P,)      — per-particle best cost (mutated in place)
    """
    vecs = jnp.asarray(params[:, 0, :], dtype=jnp.float32)             # (P, D)
    mae = np.asarray(jax.block_until_ready(_pso_mae(x_train, y_train, vecs)))  # one sync

    if check:  # correctness scaffolding kept out of the hot path
        ref = np.asarray(_ref_mae(x_train, y_train, vecs))
        assert np.allclose(mae, ref, rtol=5e-3, atol=1e-5), (mae, ref)

    # PSO bookkeeping — vectorized numpy, same semantics as the original loop.
    errg_best0 = float(localbcosts[int(np.argmin(localbcosts))])
    improved = (mae < localbcosts) | (localbcosts == -1.0)
    localbcosts[improved] = mae[improved]
    params[improved, 1, :] = params[improved, 0, :]

    if errg_best0 == -1.0 or float(mae.min()) < errg_best0:
        best_i = int(np.argmin(mae))                                    # first-wins ties
        errg_best = float(mae[best_i])
        pos_best_g = np.copy(params[best_i, 0, :])
    else:
        errg_best = errg_best0
        pos_best_g = np.zeros(params.shape[2], dtype=params.dtype)
    return pos_best_g, errg_best, params


if __name__ == "__main__":
    key = jax.random.PRNGKey(0)
    kx, ky, kp = jax.random.split(key, 3)

    X_train = jax.random.normal(kx, (N_TRAIN, N_INPUTS), dtype=jnp.float32)
    Y_train = jax.random.normal(ky, (N_TRAIN, N_OUTPUTS), dtype=jnp.float32)

    # deterministic particle positions (flat weight vectors); personal-best slot starts at zero
    pvecs = 0.1 * jax.random.normal(kp, (N_PARTICLES, PARAM_DIM), dtype=jnp.float32)
    params = np.zeros((N_PARTICLES, 2, PARAM_DIM), dtype=np.float32)
    params[:, 0, :] = np.asarray(pvecs)
    localbcosts = np.array([-1.0, -1.0, 0.5], dtype=np.float32)

    pos_best_g, errg_best, params = network_forward(
        params, localbcosts, X_train, Y_train, check=True)
    assert pos_best_g.shape == (PARAM_DIM,)
    assert np.isfinite(errg_best)
    print("KERNEL_OK")
</pallas_src>

<mosaic_0001>
module attributes {stable_mosaic.version = 11 : i64} {
  func.func @_pso_eval_kernel(%arg0: i32, %arg1: memref<8x16xbf16, #tpu.memory_space<vmem>>, %arg2: memref<8x24xf32, #tpu.memory_space<vmem>>, %arg3: memref<1x16x32xbf16, #tpu.memory_space<vmem>>, %arg4: memref<1x1x32xf32, #tpu.memory_space<vmem>>, %arg5: memref<1x32x24xbf16, #tpu.memory_space<vmem>>, %arg6: memref<1x1x24xf32, #tpu.memory_space<vmem>>, %arg7: memref<1x1x1xf32, #tpu.memory_space<vmem>>) attributes {dimension_semantics = [#tpu.dimension_semantics<parallel>], iteration_bounds = array<i64: 3>, scalar_prefetch = 0 : i64, scratch_operands = 0 : i64, tpu.core_type = #tpu.core_type<tc>, window_params = [{pipeline_mode = #tpu.pipeline_mode<synchronous>, transform_indices = @transform_0, window_bounds = array<i64: 8, 16>}, {pipeline_mode = #tpu.pipeline_mode<synchronous>, transform_indices = @transform_1, window_bounds = array<i64: 8, 24>}, {transform_indices = @transform_2, window_bounds = array<i64: 1, 16, 32>}, {transform_indices = @transform_3, window_bounds = array<i64: 1, 1, 32>}, {transform_indices = @transform_4, window_bounds = array<i64: 1, 32, 24>}, {transform_indices = @transform_5, window_bounds = array<i64: 1, 1, 24>}, {transform_indices = @transform_6, window_bounds = array<i64: 1, 1, 1>}]} {
    %c0 = arith.constant 0 : index
    %c0_0 = arith.constant 0 : index
    %0 = vector.load %arg1[%c0, %c0_0] : memref<8x16xbf16, #tpu.memory_space<vmem>>, vector<8x16xbf16>
    %c0_1 = arith.constant 0 : index
    %c0_2 = arith.constant 0 : index
    %c0_3 = arith.constant 0 : index
    %1 = vector.load %arg3[%c0_1, %c0_2, %c0_3] : memref<1x16x32xbf16, #tpu.memory_space<vmem>>, vector<1x16x32xbf16>
    %2 = vector.shape_cast %1 : vector<1x16x32xbf16> to vector<16x32xbf16>
    %cst = arith.constant dense<0.000000e+00> : vector<8x32xf32>
    %3 = tpu.matmul %0, %2, %cst {dimension_numbers = #tpu.dot_dimension_numbers<[1], [0], [0], [1], [0, 0, 1, 1], [], []>} : vector<8x16xbf16>, vector<16x32xbf16>, vector<8x32xf32> -> vector<8x32xf32>
    %c0_4 = arith.constant 0 : index
    %c0_5 = arith.constant 0 : index
    %c0_6 = arith.constant 0 : index
    %4 = vector.load %arg4[%c0_4, %c0_5, %c0_6] : memref<1x1x32xf32, #tpu.memory_space<vmem>>, vector<1x1x32xf32>
    %5 = vector.shape_cast %4 : vector<1x1x32xf32> to vector<1x32xf32>
    %6 = vector.broadcast %5 : vector<1x32xf32> to vector<8x32xf32>
    %7 = arith.addf %3, %6 : vector<8x32xf32>
    %8 = math.tanh %7 : vector<8x32xf32>
    %9 = arith.truncf %8 : vector<8x32xf32> to vector<8x32xbf16>
    %c0_7 = arith.constant 0 : index
    %c0_8 = arith.constant 0 : index
    %c0_9 = arith.constant 0 : index
    %10 = vector.load %arg5[%c0_7, %c0_8, %c0_9] : memref<1x32x24xbf16, #tpu.memory_space<vmem>>, vector<1x32x24xbf16>
    %11 = vector.shape_cast %10 : vector<1x32x24xbf16> to vector<32x24xbf16>
    %cst_10 = arith.constant dense<0.000000e+00> : vector<8x24xf32>
    %12 = tpu.matmul %9, %11, %cst_10 {dimension_numbers = #tpu.dot_dimension_numbers<[1], [0], [0], [1], [0, 0, 1, 1], [], []>} : vector<8x32xbf16>, vector<32x24xbf16>, vector<8x24xf32> -> vector<8x24xf32>
    %c0_11 = arith.constant 0 : index
    %c0_12 = arith.constant 0 : index
    %c0_13 = arith.constant 0 : index
    %13 = vector.load %arg6[%c0_11, %c0_12, %c0_13] : memref<1x1x24xf32, #tpu.memory_space<vmem>>, vector<1x1x24xf32>
    %14 = vector.shape_cast %13 : vector<1x1x24xf32> to vector<1x24xf32>
    %15 = vector.broadcast %14 : vector<1x24xf32> to vector<8x24xf32>
    %16 = arith.addf %12, %15 : vector<8x24xf32>
    %c0_14 = arith.constant 0 : index
    %c0_15 = arith.constant 0 : index
    %17 = vector.load %arg2[%c0_14, %c0_15] : memref<8x24xf32, #tpu.memory_space<vmem>>, vector<8x24xf32>
    %18 = arith.subf %16, %17 : vector<8x24xf32>
    %19 = math.absf %18 : vector<8x24xf32>
    %cst_16 = arith.constant dense<0.000000e+00> : vector<24xf32>
    %20 = vector.multi_reduction <add>, %19, %cst_16 [0] : vector<8x24xf32> to vector<24xf32>
    %21 = vector.shape_cast %20 : vector<24xf32> to vector<1x24xf32>
    %cst_17 = arith.constant dense<0.000000e+00> : vector<1xf32>
    %22 = vector.multi_reduction <add>, %21, %cst_17 [1] : vector<1x24xf32> to vector<1xf32>
    %23 = vector.shape_cast %22 : vector<1xf32> to vector<1x1xf32>
    %cst_18 = arith.constant 0.00520833349 : f32
    %24 = vector.broadcast %cst_18 : f32 to vector<1x1xf32>
    %25 = arith.mulf %23, %24 : vector<1x1xf32>
    %c0_19 = arith.constant 0 : index
    %c0_20 = arith.constant 0 : index
    %c0_21 = arith.constant 0 : index
    %26 = vector.load %arg7[%c0_19, %c0_20, %c0_21] : memref<1x1x1xf32, #tpu.memory_space<vmem>>, vector<1x1x1xf32>
    %27 = vector.shape_cast %26 : vector<1x1x1xf32> to vector<1x1xf32>
    %28 = vector.shape_cast %25 : vector<1x1xf32> to vector<1x1x1xf32>
    tpu.vector_store %arg7[%c0_19, %c0_20, %c0_21], %28 {strides = array<i32>} : memref<1x1x1xf32, #tpu.memory_space<vmem>>, vector<1x1x1xf32>,
    return
  }
  func.func @transform_0(%arg0: i32) -> (i32, i32) {
    %c0_i32 = arith.constant 0 : i32
    %c0_i32_0 = arith.constant 0 : i32
    %c0_i32_1 = arith.constant 0 : i32
    return %c0_i32, %c0_i32_0 : i32, i32
  }
  func.func @transform_1(%arg0: i32) -> (i32, i32) {
    %c0_i32 = arith.constant 0 : i32
    %c0_i32_0 = arith.constant 0 : i32
    %c0_i32_1 = arith.constant 0 : i32
    return %c0_i32, %c0_i32_0 : i32, i32
  }
  func.func @transform_2(%arg0: i32) -> (i32, i32, i32) {
    %c0_i32 = arith.constant 0 : i32
    %c0_i32_0 = arith.constant 0 : i32
    %c0_i32_1 = arith.constant 0 : i32
    return %arg0, %c0_i32, %c0_i32_0 : i32, i32, i32
  }
  func.func @transform_3(%arg0: i32) -> (i32, i32, i32) {
    %c0_i32 = arith.constant 0 : i32
    %c0_i32_0 = arith.constant 0 : i32
    %c0_i32_1 = arith.constant 0 : i32
    return %arg0, %c0_i32, %c0_i32_0 : i32, i32, i32
  }
  func.func @transform_4(%arg0: i32) -> (i32, i32, i32) {
    %c0_i32 = arith.constant 0 : i32
    %c0_i32_0 = arith.constant 0 : i32
    %c0_i32_1 = arith.constant 0 : i32
    return %arg0, %c0_i32, %c0_i32_0 : i32, i32, i32
  }
  func.func @transform_5(%arg0: i32) -> (i32, i32, i32) {
    %c0_i32 = arith.constant 0 : i32
    %c0_i32_0 = arith.constant 0 : i32
    %c0_i32_1 = arith.constant 0 : i32
    return %arg0, %c0_i32, %c0_i32_0 : i32, i32, i32
  }
  func.func @transform_6(%arg0: i32) -> (i32, i32, i32) {
    %c0_i32 = arith.constant 0 : i32
    %c0_i32_0 = arith.constant 0 : i32
    %c0_i32_1 = arith.constant 0 : i32
    return %arg0, %c0_i32, %c0_i32_0 : i32, i32, i32
  }
}

</mosaic_0001>

<llo_original>
// kernel: _pso_mae.1
$region0: #{_pso_mae.1}
  #allocation0 [shape = 'u32[]', space=smem, size = 0x4, offset = 0x4, fixed_abs, tag = 'smem constant byte address 0x4 - core index']
  #allocation1 [shape = 'u32[144,128]{1,0:T(1,128)}', space=vmem, size = 0x12000, scoped, tag = 'internal scratch']
  %s0 = inlined_call_operand.vmem [shape: bf16[8,16], index: 0, kind: input, shape index: {}]
  %s1 = inlined_call_operand.vmem [shape: f32[8,24], index: 1, kind: input, shape index: {}]
  %s2 = inlined_call_operand.vmem [shape: bf16[3,16,32], index: 2, kind: input, shape index: {}]
  %s3 = inlined_call_operand.vmem [shape: f32[3,1,32], index: 3, kind: input, shape index: {}]
  %s4 = inlined_call_operand.vmem [shape: bf16[3,32,24], index: 4, kind: input, shape index: {}]
  %s5 = inlined_call_operand.vmem [shape: f32[3,1,24], index: 5, kind: input, shape index: {}]
  %s6 = inlined_call_operand.vmem [shape: f32[3,1,1], index: 6, kind: output, shape index: {}]
  %s7 = sld [smem:[#allocation0]]
  $region57: #{_pso_mae.1} parent=0
    _
  %s9 = ssub.s32 1, %s7
  %s10 = scalar_select 0, %s9, %s7
  loop: start=0, step=1, limit=5
  $region2: #{_pso_mae.1} parent=0 // loop_pre_header
    _
  $region3: #{_pso_mae.1} parent=0 // loop_header
    %s12 = sphi 0, %s16
    %p13 = scmp.ge.s32.totalorder %s12, 5
    %s20 = sphi 0, %s20
    %s22 = sphi 0, %s20
    %s23 = sphi 0, %s22
    %s37 = sphi 0, %s23
    %s41 = sphi 0, %s41
    %s43 = sphi 0, %s41
    %s44 = sphi 0, %s43
    %s58 = sphi 0, %s44
    %s64 = sphi 0, %s66
    %s67 = sphi 0, %s64
    %s68 = sphi 0, %s67
    %s84 = sphi 0, %s68
    %s90 = sphi 0, %s92
    %s93 = sphi 0, %s90
    %s94 = sphi 0, %s93
    %s110 = sphi 0, %s94
    %s116 = sphi 0, %s118
    %s119 = sphi 0, %s116
    %s120 = sphi 0, %s119
    %s136 = sphi 0, %s120
    %s142 = sphi 0, %s144
    %s145 = sphi 0, %s142
    %s146 = sphi 0, %s145
    %s162 = sphi 0, %s146
    %s168 = sphi 0, %s170
    %s171 = sphi 0, %s168
    %s172 = sphi 0, %s171
    %s188 = sphi 0, %s172
  $region4: #{_pso_mae.1} parent=0 // loop_header_branch
    %15 = sbr.rel (%p13) target = $region8
  $region5: #{_pso_mae.1} parent=0 // loop_body
    %s17 = ssub.s32 %s12, 1
    %s18 = ssub.s32 %s12, 2
    %s19 = sadd.s32 %s12, 1
    %s21 = sadd.s32 %s20, 1
    %p24 = scmp.eq.s32.totalorder %s12, 2
    %p25 = scmp.ne.s32.totalorder %s20, %s22
    %p26 = scmp.eq.s32.totalorder %s12, 0
    %p27 = por %p25, %p26
    %p28 = scmp.ne.s32.totalorder %s20, %s22
    %p29 = scmp.eq.s32.totalorder %s17, 2
    %p30 = por %p28, %p29
    %p31 = scmp.ne.s32.totalorder %s22, %s23
    %p32 = scmp.eq.s32.totalorder %s17, 0
    %p33 = por %p31, %p32
    %p34 = scmp.ne.s32.totalorder %s22, %s23
    %p35 = scmp.eq.s32.totalorder %s18, 2
    %p36 = por %p34, %p35
    %p38 = scmp.ne.s32.totalorder %s23, %s37
    %p39 = scmp.eq.s32.totalorder %s18, 0
    %p40 = por %p38, %p39
    %s42 = sadd.s32 %s41, 1
    %p45 = scmp.eq.s32.totalorder %s12, 2
    %p46 = scmp.ne.s32.totalorder %s41, %s43
    %p47 = scmp.eq.s32.totalorder %s12, 0
    %p48 = por %p46, %p47
    %p49 = scmp.ne.s32.totalorder %s41, %s43
    %p50 = scmp.eq.s32.totalorder %s17, 2
    %p51 = por %p49, %p50
    %p52 = scmp.ne.s32.totalorder %s43, %s44
    %p53 = scmp.eq.s32.totalorder %s17, 0
    %p54 = por %p52, %p53
    %p55 = scmp.ne.s32.totalorder %s43, %s44
    %p56 = scmp.eq.s32.totalorder %s18, 2
    %p57 = por %p55, %p56
    %p59 = scmp.ne.s32.totalorder %s44, %s58
    %p60 = scmp.eq.s32.totalorder %s18, 0
    %p61 = por %p59, %p60
    %s62 = ssub.s32 %s12, %s19
    %p63 = scmp.eq.s32.totalorder %s62, 0
    %s65 = sadd.s32 %s64, 1
    %s66 = scalar_select %p63, %s64, %s65
    %p69 = pneg %p63
    %p70 = scmp.eq.s32.totalorder %s12, 2
    %p71 = por %p69, %p70
    %p72 = scmp.ne.s32.totalorder %s64, %s67
    %p73 = scmp.eq.s32.totalorder %s12, 0
    %p74 = por %p72, %p73
    %p75 = scmp.ne.s32.totalorder %s64, %s67
    %p76 = scmp.eq.s32.totalorder %s17, 2
    %p77 = por %p75, %p76
    %p78 = scmp.ne.s32.totalorder %s67, %s68
    %p79 = scmp.eq.s32.totalorder %s17, 0
    %p80 = por %p78, %p79
    %p81 = scmp.ne.s32.totalorder %s67, %s68
    %p82 = scmp.eq.s32.totalorder %s18, 2
    %p83 = por %p81, %p82
    %p85 = scmp.ne.s32.totalorder %s68, %s84
    %p86 = scmp.eq.s32.totalorder %s18, 0
    %p87 = por %p85, %p86
    %s88 = ssub.s32 %s12, %s19
    %p89 = scmp.eq.s32.totalorder %s88, 0
    %s91 = sadd.s32 %s90, 1
    %s92 = scalar_select %p89, %s90, %s91
    %p95 = pneg %p89
    %p96 = scmp.eq.s32.totalorder %s12, 2
    %p97 = por %p95, %p96
    %p98 = scmp.ne.s32.totalorder %s90, %s93
    %p99 = scmp.eq.s32.totalorder %s12, 0
    %p100 = por %p98, %p99
    %p101 = scmp.ne.s32.totalorder %s90, %s93
    %p102 = scmp.eq.s32.totalorder %s17, 2
    %p103 = por %p101, %p102
    %p104 = scmp.ne.s32.totalorder %s93, %s94
    %p105 = scmp.eq.s32.totalorder %s17, 0
    %p106 = por %p104, %p105
    %p107 = scmp.ne.s32.totalorder %s93, %s94
    %p108 = scmp.eq.s32.totalorder %s18, 2
    %p109 = por %p107, %p108
    %p111 = scmp.ne.s32.totalorder %s94, %s110
    %p112 = scmp.eq.s32.totalorder %s18, 0
    %p113 = por %p111, %p112
    %s114 = ssub.s32 %s12, %s19
    %p115 = scmp.eq.s32.totalorder %s114, 0
    %s117 = sadd.s32 %s116, 1
    %s118 = scalar_select %p115, %s116, %s117
    %p121 = pneg %p115
    %p122 = scmp.eq.s32.totalorder %s12, 2
    %p123 = por %p121, %p122
    %p124 = scmp.ne.s32.totalorder %s116, %s119
    %p125 = scmp.eq.s32.totalorder %s12, 0
    %p126 = por %p124, %p125
    %p127 = scmp.ne.s32.totalorder %s116, %s119
    %p128 = scmp.eq.s32.totalorder %s17, 2
    %p129 = por %p127, %p128
    %p130 = scmp.ne.s32.totalorder %s119, %s120
    %p131 = scmp.eq.s32.totalorder %s17, 0
    %p132 = por %p130, %p131
    %p133 = scmp.ne.s32.totalorder %s119, %s120
    %p134 = scmp.eq.s32.totalorder %s18, 2
    %p135 = por %p133, %p134
    %p137 = scmp.ne.s32.totalorder %s120, %s136
    %p138 = scmp.eq.s32.totalorder %s18, 0
    %p139 = por %p137, %p138
    %s140 = ssub.s32 %s12, %s19
    %p141 = scmp.eq.s32.totalorder %s140, 0
    %s143 = sadd.s32 %s142, 1
    %s144 = scalar_select %p141, %s142, %s143
    %p147 = pneg %p141
    %p148 = scmp.eq.s32.totalorder %s12, 2
    %p149 = por %p147, %p148
    %p150 = scmp.ne.s32.totalorder %s142, %s145
    %p151 = scmp.eq.s32.totalorder %s12, 0
    %p152 = por %p150, %p151
    %p153 = scmp.ne.s32.totalorder %s142, %s145
    %p154 = scmp.eq.s32.totalorder %s17, 2
    %p155 = por %p153, %p154
    %p156 = scmp.ne.s32.totalorder %s145, %s146
    %p157 = scmp.eq.s32.totalorder %s17, 0
    %p158 = por %p156, %p157
    %p159 = scmp.ne.s32.totalorder %s145, %s146
    %p160 = scmp.eq.s32.totalorder %s18, 2
    %p161 = por %p159, %p160
    %p163 = scmp.ne.s32.totalorder %s146, %s162
    %p164 = scmp.eq.s32.totalorder %s18, 0
    %p165 = por %p163, %p164
    %s166 = ssub.s32 %s12, %s19
    %p167 = scmp.eq.s32.totalorder %s166, 0
    %s169 = sadd.s32 %s168, 1
    %s170 = scalar_select %p167, %s168, %s169
    %p173 = pneg %p167
    %p174 = scmp.eq.s32.totalorder %s12, 2
    %p175 = por %p173, %p174
    %p176 = scmp.ne.s32.totalorder %s168, %s171
    %p177 = scmp.eq.s32.totalorder %s12, 0
    %p178 = por %p176, %p177
    %p179 = scmp.ne.s32.totalorder %s168, %s171
    %p180 = scmp.eq.s32.totalorder %s17, 2
    %p181 = por %p179, %p180
    %p182 = scmp.ne.s32.totalorder %s171, %s172
    %p183 = scmp.eq.s32.totalorder %s17, 0
    %p184 = por %p182, %p183
    %p185 = scmp.ne.s32.totalorder %s171, %s172
    %p186 = scmp.eq.s32.totalorder %s18, 2
    %p187 = por %p185, %p186
    %p189 = scmp.ne.s32.totalorder %s172, %s188
    %p190 = scmp.eq.s32.totalorder %s18, 0
    %p191 = por %p189, %p190
    %p192 = scmp.le.s32.totalorder 1, %s12
    %p193 = scmp.lt.s32.totalorder %s12, 4
    %p194 = pnand %p192, %p193
    %p195 = pneg %p194
    // Predicated region
    $region9: #{_pso_mae.1} parent=5 // pred_check
      _
    $region10: #{_pso_mae.1} parent=5 // pred_check_branch
      %197 = sbr.rel (%p194) target = $region12
    $region11: #{_pso_mae.1} parent=5 // pred_region
      %s198 = ssub.s32 %s12, 1
      // Predicated region
      $region13: #{_pso_mae.1} parent=11 // pred_check
        %p199 = pneg %p33
      $region14: #{_pso_mae.1} parent=11 // pred_check_branch
        %201 = sbr.rel (%p199) target = $region16
      $region15: #{_pso_mae.1} parent=11 // pred_region
        _
      $region16: #{_pso_mae.1} parent=11 // pred_fallthru
        _
      // Predicated region
      $region17: #{_pso_mae.1} parent=11 // pred_check
        %p202 = pneg %p54
      $region18: #{_pso_mae.1} parent=11 // pred_check_branch
        %204 = sbr.rel (%p202) target = $region20
      $region19: #{_pso_mae.1} parent=11 // pred_region
        _
      $region20: #{_pso_mae.1} parent=11 // pred_fallthru
        _
    $region12: #{_pso_mae.1} parent=5 // pred_fallthru
      _
    %p205 = scmp.lt.s32.totalorder %s12, 3
    // Predicated region
    $region21: #{_pso_mae.1} parent=5 // pred_check
      %p206 = pneg %p205
    $region22: #{_pso_mae.1} parent=5 // pred_check_branch
      %208 = sbr.rel (%p206) target = $region24
    $region23: #{_pso_mae.1} parent=5 // pred_region
      // Predicated region
      $region25: #{_pso_mae.1} parent=23 // pred_check
        %p209 = pneg %p74
      $region26: #{_pso_mae.1} parent=23 // pred_check_branch
        %211 = sbr.rel (%p209) target = $region28
      $region27: #{_pso_mae.1} parent=23 // pred_region
        %p212 = scmp.lt.s32.totalorder %s12, 2
        %s213 = scalar_select %p212, %s12, 2
        %s214 = smul.addr %s213, 2
        %s215 = smul.addr %s214, 4
        %s216 = scalar_lea.vmem %s2, %s215
      $region28: #{_pso_mae.1} parent=23 // pred_fallthru
        _
      // Predicated region
      $region29: #{_pso_mae.1} parent=23 // pred_check
        %p217 = pneg %p100
      $region30: #{_pso_mae.1} parent=23 // pred_check_branch
        %219 = sbr.rel (%p217) target = $region32
      $region31: #{_pso_mae.1} parent=23 // pred_region
        %p220 = scmp.lt.s32.totalorder %s12, 2
        %s221 = scalar_select %p220, %s12, 2
        %s222 = scalar_lea.vmem %s3, %s221
      $region32: #{_pso_mae.1} parent=23 // pred_fallthru
        _
      // Predicated region
      $region33: #{_pso_mae.1} parent=23 // pred_check
        %p223 = pneg %p126
      $region34: #{_pso_mae.1} parent=23 // pred_check_branch
        %225 = sbr.rel (%p223) target = $region36
      $region35: #{_pso_mae.1} parent=23 // pred_region
        %p226 = scmp.lt.s32.totalorder %s12, 2
        %s227 = scalar_select %p226, %s12, 2
        %s228 = smul.addr %s227, 4
        %s229 = smul.addr %s228, 4
        %s230 = scalar_lea.vmem %s4, %s229
      $region36: #{_pso_mae.1} parent=23 // pred_fallthru
        _
      // Predicated region
      $region37: #{_pso_mae.1} parent=23 // pred_check
        %p231 = pneg %p152
      $region38: #{_pso_mae.1} parent=23 // pred_check_branch
        %233 = sbr.rel (%p231) target = $region40
      $region39: #{_pso_mae.1} parent=23 // pred_region
        %p234 = scmp.lt.s32.totalorder %s12, 2
        %s235 = scalar_select %p234, %s12, 2
        %s236 = scalar_lea.vmem %s5, %s235
      $region40: #{_pso_mae.1} parent=23 // pred_fallthru
        _
    $region24: #{_pso_mae.1} parent=5 // pred_fallthru
      _
    %p237 = scmp.le.s32.totalorder 1, %s12
    %p238 = scmp.lt.s32.totalorder %s12, 4
    %p239 = pnand %p237, %p238
    %p240 = pneg %p239
    // Predicated region
    $region41: #{_pso_mae.1} parent=5 // pred_check
      _
    $region42: #{_pso_mae.1} parent=5 // pred_check_branch
      %242 = sbr.rel (%p239) target = $region44
    $region43: #{_pso_mae.1} parent=5 // pred_region
      %s243 = ssub.s32 %s12, 1
      %p244 = pneg %p33
      %p245 = pneg %p30
      %p246 = pneg %p54
      %p247 = pneg %p51
      %p248 = scmp.lt.s32.totalorder %s17, 2
      %s249 = scalar_select %p248, %s17, 2
      %s250 = smul.addr %s249, 2
      %s251 = smul.addr %s250, 4
      %s252 = scalar_lea.vmem %s2, %s251
      %p253 = pneg %p80
      %p254 = pneg %p77
      %p255 = scmp.lt.s32.totalorder %s17, 2
      %s256 = scalar_select %p255, %s17, 2
      %s257 = scalar_lea.vmem %s3, %s256
      %p258 = pneg %p106
      %p259 = pneg %p103
      %p260 = scmp.lt.s32.totalorder %s17, 2
      %s261 = scalar_select %p260, %s17, 2
      %s262 = smul.addr %s261, 4
      %s263 = smul.addr %s262, 4
      %s264 = scalar_lea.vmem %s4, %s263
      %p265 = pneg %p132
      %p266 = pneg %p129
      %p267 = scmp.lt.s32.totalorder %s17, 2
      %s268 = scalar_select %p267, %s17, 2
      %s269 = scalar_lea.vmem %s5, %s268
      %p270 = pneg %p158
      %p271 = pneg %p155
      %p272 = pneg %p184
      %p273 = pneg %p181
      %p274 = scmp.lt.s32.totalorder %s17, 2
      %s275 = scalar_select %p274, %s17, 2
      %s276 = scalar_lea.vmem %s6, %s275
      %p277 = scmp.lt.s32.totalorder %s17, 2
      %s278 = scalar_select %p277, %s17, 2
      %s279 = smul.addr %s278, 2
      %s280 = smul.addr %s279, 4
      %s281 = scalar_lea.vmem %s2, %s280
      %p282 = scmp.lt.s32.totalorder %s17, 2
      %s283 = scalar_select %p282, %s17, 2
      %s284 = scalar_lea.vmem %s3, %s283
      %p285 = scmp.lt.s32.totalorder %s17, 2
      %s286 = scalar_select %p285, %s17, 2
      %s287 = smul.addr %s286, 4
      %s288 = smul.addr %s287, 4
      %s289 = scalar_lea.vmem %s4, %s288
      %p290 = scmp.lt.s32.totalorder %s17, 2
      %s291 = scalar_select %p290, %s17, 2
      %s292 = scalar_lea.vmem %s5, %s291
      %p293 = scmp.lt.s32.totalorder %s17, 2
      %s294 = scalar_select %p293, %s17, 2
      %s295 = scalar_lea.vmem %s6, %s294
      %v297 = vld [vmem:[%s0] sm:$0xf]
      %v298 = vld [vmem:[%s281] sm:$0xf]
      %v299 = vld [vmem:[%s281 + $0x4] sm:$0xf]
      %v300 = vld [vmem:[%s284] sm:$0x1]
      %v302 = vlaneseq
      %v303 = vshrl.u32 %v302, 7
      %v304 = vsub.s32 0, %v303
      %v305 = vrot.slane %v300, %v304
      %v309 = vunpack.c.l.b16 %v298
      %v310 = vunpack.c.l.b16 %v299
      %v311 = vpack.c.b16 %v310, %v309
      %vm313 = vcmask 130048
      %v315 = vsel %vm313, %v297, 0
      %317 = vmatprep.subr.bf16.mxu0 0
      %318 = vmatpush1.bf16.msra.mxu0 %v311
      %319 = vmatprep.subr.bf16.mxu0 0
      %320 = vmatpush1.bf16.msra.mxu0 0
      %321 = vmatprep.subr.bf16.mxu0 0
      %322 = vmatpush1.bf16.msra.mxu0 0
      %323 = vmatprep.subr.bf16.mxu0 0
      %324 = vmatpush1.bf16.msra.mxu0 0
      %325 = vmatprep.subr.bf16.mxu0 0
      %326 = vmatpush1.bf16.msra.mxu0 0
      %327 = vmatprep.subr.bf16.mxu0 0
      %328 = vmatpush1.bf16.msra.mxu0 0
      %329 = vmatprep.subr.bf16.mxu0 0
      %330 = vmatpush1.bf16.msra.mxu0 0
      %331 = vmatprep.subr.bf16.mxu0 0
      %332 = vmatpush1.bf16.msra.mxu0 0
      %333 = vmatprep.subr.bf16.mxu0 0
      %334 = vmatpush1.bf16.msra.mxu0 0
      %335 = vmatprep.subr.bf16.mxu0 0
      %336 = vmatpush1.bf16.msra.mxu0 0
      %337 = vmatprep.subr.bf16.mxu0 0
      %338 = vmatpush1.bf16.msra.mxu0 0
      %339 = vmatprep.subr.bf16.mxu0 0
      %340 = vmatpush1.bf16.msra.mxu0 0
      %341 = vmatprep.subr.bf16.mxu0 0
      %342 = vmatpush1.bf16.msra.mxu0 0
      %343 = vmatprep.subr.bf16.mxu0 0
      %344 = vmatpush1.bf16.msra.mxu0 0
      %345 = vmatprep.subr.bf16.mxu0 0
      %346 = vmatpush1.bf16.msra.mxu0 0
      %347 = vmatprep.subr.bf16.mxu0 0
      %348 = vmatpush1.bf16.msra.mxu0 0
      %349 = vmatprep.mubr.bf16.mxu0 0
      %350 = vmatmul.mubr.bf16.gmra.mrb[0].mxu0 %v315
      %v351 = vpop.f32.mrb[0].mxu0
      %v352 = vadd.f32 %v305, %v351
      %v353 = vpop.f32.mrb[0].mxu0
      %v354 = vpop.f32.mrb[0].mxu0
      %v355 = vpop.f32.mrb[0].mxu0
      %356 = vdwg.mxu0
      %v357 = vtanh.pop %v352
      %v358 = vpack.c.bf16 %v357, %v357
      %v359 = vld [vmem:[%s289] sm:$0xf]
      %v360 = vld [vmem:[%s289 + $0x4] sm:$0xf]
      %v361 = vld [vmem:[%s289 + $0x8] sm:$0xf]
      %v362 = vld [vmem:[%s289 + $0xc] sm:$0xf]
      %v363 = vld [vmem:[%s292] sm:$0x1]
      %v365 = vlaneseq
      %v366 = vshrl.u32 %v365, 7
      %v367 = vsub.s32 0, %v366
      %v368 = vrot.slane %v363, %v367
      %v374 = vunpack.c.l.b16 %v359
      %v375 = vunpack.c.l.b16 %v360
      %v376 = vunpack.c.l.b16 %v361
      %v377 = vunpack.c.l.b16 %v362
      %v378 = vpack.c.b16 %v375, %v374
      %v379 = vpack.c.b16 %v377, %v376
      %vm382 = vcmask 261120
      %v384 = vsel %vm382, %v358, 0
      %386 = vmatprep.subr.bf16.mxu0 0
      %387 = vmatpush1.bf16.msra.mxu0 %v378
      %388 = vmatprep.subr.bf16.mxu0 0
      %389 = vmatpush1.bf16.msra.mxu0 %v379
      %390 = vmatprep.subr.bf16.mxu0 0
      %391 = vmatpush1.bf16.msra.mxu0 0
      %392 = vmatprep.subr.bf16.mxu0 0
      %393 = vmatpush1.bf16.msra.mxu0 0
      %394 = vmatprep.subr.bf16.mxu0 0
      %395 = vmatpush1.bf16.msra.mxu0 0
      %396 = vmatprep.subr.bf16.mxu0 0
      %397 = vmatpush1.bf16.msra.mxu0 0
      %398 = vmatprep.subr.bf16.mxu0 0
      %399 = vmatpush1.bf16.msra.mxu0 0
      %400 = vmatprep.subr.bf16.mxu0 0
      %401 = vmatpush1.bf16.msra.mxu0 0
      %402 = vmatprep.subr.bf16.mxu0 0
      %403 = vmatpush1.bf16.msra.mxu0 0
      %404 = vmatprep.subr.bf16.mxu0 0
      %405 = vmatpush1.bf16.msra.mxu0 0
      %406 = vmatprep.subr.bf16.mxu0 0
      %407 = vmatpush1.bf16.msra.mxu0 0
      %408 = vmatprep.subr.bf16.mxu0 0
      %409 = vmatpush1.bf16.msra.mxu0 0
      %410 = vmatprep.subr.bf16.mxu0 0
      %411 = vmatpush1.bf16.msra.mxu0 0
      %412 = vmatprep.subr.bf16.mxu0 0
      %413 = vmatpush1.bf16.msra.mxu0 0
      %414 = vmatprep.subr.bf16.mxu0 0
      %415 = vmatpush1.bf16.msra.mxu0 0
      %416 = vmatprep.subr.bf16.mxu0 0
      %417 = vmatpush1.bf16.msra.mxu0 0
      %418 = vmatprep.mubr.bf16.mxu0 0
      %419 = vmatmul.mubr.bf16.gmra.mrb[0].mxu0 %v384
      %v420 = vpop.f32.mrb[0].mxu0
      %v421 = vadd.f32 %v368, %v420
      %v422 = vpop.f32.mrb[0].mxu0
      %v423 = vpop.f32.mrb[0].mxu0
      %v424 = vpop.f32.mrb[0].mxu0
      %425 = vdwg.mxu0
      %v426 = vld [vmem:[%s1] sm:$0xff]
      %v427 = vsub.f32 %v421, %v426
      %v428 = vand.u32 2147483647, %v427
      %vm429 = vcmask 195584
      %v430 = vsel %vm429, %v428, 0.0
      %v431 = vrot.slane %v430, 4
      %v432 = vadd.f32 %v430, %v431
      %v433 = vrot.slane %v432, 2
      %v434 = vadd.f32 %v432, %v433
      %v435 = vrot.slane %v434, 1
      %v436 = vadd.f32 %v434, %v435
      %v437 = vsel %vm429, %v436, 0.0
      %438 = vadd.xlane.f32.xlu0 %v437
      %v439 = vpop.xlane.xlu0 %438
      %v440 = vmul.f32 %v439, 0.0052083335
      %vm441 = vcmask 0
      %442 = vst.msk [vmem:[%s295] sm:$0x1] %vm441, %v440
      %p443 = scmp.lt.s32.totalorder %s17, 2
      %s444 = scalar_select %p443, %s17, 2
      %s445 = scalar_lea.vmem %s6, %s444
      // Predicated region
      $region45: #{_pso_mae.1} parent=43 // pred_check
        %p446 = pneg %p181
      $region46: #{_pso_mae.1} parent=43 // pred_check_branch
        %448 = sbr.rel (%p446) target = $region48
      $region47: #{_pso_mae.1} parent=43 // pred_region
        _
      $region48: #{_pso_mae.1} parent=43 // pred_fallthru
        _
    $region44: #{_pso_mae.1} parent=5 // pred_fallthru
      _
    %p449 = scmp.le.s32.totalorder 2, %s12
    // Predicated region
    $region49: #{_pso_mae.1} parent=5 // pred_check
      %p450 = pneg %p449
    $region50: #{_pso_mae.1} parent=5 // pred_check_branch
      %452 = sbr.rel (%p450) target = $region52
    $region51: #{_pso_mae.1} parent=5 // pred_region
      %s453 = ssub.s32 %s12, 2
      // Predicated region
      $region53: #{_pso_mae.1} parent=51 // pred_check
        %p454 = pneg %p187
      $region54: #{_pso_mae.1} parent=51 // pred_check_branch
        %456 = sbr.rel (%p454) target = $region56
      $region55: #{_pso_mae.1} parent=51 // pred_region
        %p457 = scmp.lt.s32.totalorder %s18, 2
        %s458 = scalar_select %p457, %s18, 2
        %s459 = scalar_lea.vmem %s6, %s458
      $region56: #{_pso_mae.1} parent=51 // pred_fallthru
        _
    $region52: #{_pso_mae.1} parent=5 // pred_fallthru
      _
  $region6: #{_pso_mae.1} parent=0 // loop_footer
    %s16 = sadd.s32 1, %s12
  $region7: #{_pso_mae.1} parent=0 // loop_footer_branch
    %11 = sbr.rel target = $region3
  $region8: #{_pso_mae.1} parent=0 // loop_exit
    _

</llo_original>
